<compile_context>
chip_gen: v5e
topology: v5e:2x2
jax: 0.10.0
libtpu: 0.0.40
codegen_flags: <defaults>
</compile_context>

<pallas_src>
import functools

import jax
import jax.numpy as jnp
from jax.experimental import pallas as pl
from jax.experimental.pallas import tpu as pltpu


_VMEM_LIMIT_BYTES = 32 * 1024 * 1024    # safe on v5e / v6e / v7x
_BLOCK_BUDGET_BYTES = 4 * 1024 * 1024   # per double-buffered data block


def _largest_divisor_leq(n, cap):
    """Largest divisor of n that is <= cap (always >= 1)."""
    best = 1
    d = 1
    while d * d <= n:
        if n % d == 0:
            if d <= cap:
                best = max(best, d)
            q = n // d
            if q <= cap:
                best = max(best, q)
        d += 1
    return best


def _pick_spatial_tile(s, c, itemsize, budget_bytes):
    """Largest divisor of `s` that is a multiple of 128 and whose (c, tile)
    block fits `budget_bytes`; falls back to the smallest 128-multiple divisor
    (best effort) or the full spatial extent when no such divisor exists."""
    divs = [d for d in range(128, s + 1, 128) if s % d == 0]
    if not divs:
        return s  # block dim equal to the full array dim is always legal
    fitting = [d for d in divs if c * d * itemsize <= budget_bytes]
    return max(fitting) if fitting else min(divs)


# ------------------------------ fused kernel ------------------------------

def _se_fused_kernel(x_ref, w1t_ref, w2t_ref, o_ref, *, inv_hw):
    # x_ref / o_ref : (Nb, C, S) per-sample slabs, spatial on lanes (native dtype)
    # w1t_ref       : (C, C//r)  = torch Linear(C, C//r).weight.T
    # w2t_ref       : (C//r, C)  = torch Linear(C//r, C).weight.T
    x = x_ref[...].astype(jnp.float32)
    pooled = jnp.sum(x, axis=-1) * inv_hw                                  # (Nb, C)
    w1t = w1t_ref[...].astype(jnp.float32)
    w2t = w2t_ref[...].astype(jnp.float32)
    hid = jnp.maximum(
        jnp.dot(pooled, w1t, preferred_element_type=jnp.float32), 0.0)     # (Nb, Cr)
    gate = jax.nn.sigmoid(
        jnp.dot(hid, w2t, preferred_element_type=jnp.float32))             # (Nb, C)
    o_ref[...] = (x * gate[:, :, None]).astype(o_ref.dtype)


# --------------------- two-pass fallback (huge slabs) ---------------------

def _pool_gate_kernel(x_ref, w1_ref, w2_ref, gate_ref, acc_ref, *, inv_hw):
    # x_ref : (1, C, TILE_S);  w1_ref: (C//r, C);  w2_ref: (C, C//r)
    # gate_ref : (1, C, 1) f32;  acc_ref : (1, C, 1) f32 running spatial sum.
    s = pl.program_id(1)

    @pl.when(s == 0)
    def _():
        acc_ref[...] = jnp.zeros_like(acc_ref)

    acc_ref[...] += jnp.sum(x_ref[...].astype(jnp.float32), axis=-1, keepdims=True)

    @pl.when(s == pl.num_programs(1) - 1)
    def _():
        c = acc_ref.shape[1]
        pooled = jnp.broadcast_to(acc_ref[0] * inv_hw, (c, 128))           # (C, 128)
        w1 = w1_ref[...].astype(jnp.float32)
        w2 = w2_ref[...].astype(jnp.float32)
        hid = jnp.maximum(
            jnp.dot(w1, pooled, preferred_element_type=jnp.float32), 0.0)  # (Cr, 128)
        gate = jax.nn.sigmoid(
            jnp.dot(w2, hid, preferred_element_type=jnp.float32))          # (C, 128)
        gate_ref[0] = gate[:, 0:1]


def _apply_gate_kernel(x_ref, gate_ref, o_ref):
    # x_ref/o_ref: (1, C, TILE_S) native dtype; gate_ref: (1, C, 1) f32.
    o_ref[...] = (x_ref[...].astype(jnp.float32) * gate_ref[...]).astype(o_ref.dtype)


# ------------------------------- wrapper -------------------------------

def squeeze_excitation_forward(x_nchw, w1, w2, *,
                               block_budget_bytes=_BLOCK_BUDGET_BYTES):
    """y = x * sigmoid(W2 @ relu(W1 @ mean_{H,W}(x))), torch-layout weights
    (W1: (C//r, C), W2: (C, C//r)).  Matches Squeeze_Excitation.forward."""
    n, c, h, w = x_nchw.shape
    s = h * w
    cr = w1.shape[0]
    inv_hw = 1.0 / float(s)

    x3 = x_nchw.reshape(n, c, s)                    # free view, native dtype
    itemsize = jnp.dtype(x3.dtype).itemsize
    per_sample_bytes = c * s * itemsize

    if per_sample_bytes <= block_budget_bytes:
        # ---------------- fused single-pass path ----------------
        nb = _largest_divisor_leq(n, max(1, block_budget_bytes // per_sample_bytes))
        w1t = w1.T  # (C, Cr)  tiny one-time transposes, standard MXU layout
        w2t = w2.T  # (Cr, C)
        y3 = pl.pallas_call(
            functools.partial(_se_fused_kernel, inv_hw=inv_hw),
            out_shape=jax.ShapeDtypeStruct((n, c, s), x3.dtype),
            grid=(n // nb,),
            in_specs=[
                pl.BlockSpec((nb, c, s), lambda b: (b, 0, 0)),
                pl.BlockSpec((c, cr), lambda b: (0, 0)),
                pl.BlockSpec((cr, c), lambda b: (0, 0)),
            ],
            out_specs=pl.BlockSpec((nb, c, s), lambda b: (b, 0, 0)),
            compiler_params=pltpu.CompilerParams(
                dimension_semantics=("parallel",),
                vmem_limit_bytes=_VMEM_LIMIT_BYTES),
            cost_estimate=pl.CostEstimate(
                flops=2 * n * c * s + 4 * n * c * cr,
                transcendentals=n * c,
                bytes_accessed=2 * n * c * s * itemsize + 8 * c * cr),
        )(x3, w1t, w2t)
        return y3.reshape(n, c, h, w)

    # ---------------- two-pass fallback (per-sample slab > budget) ----------------
    tile_s = _pick_spatial_tile(s, c, itemsize, block_budget_bytes)
    s_tiles = s // tile_s

    gate = pl.pallas_call(
        functools.partial(_pool_gate_kernel, inv_hw=inv_hw),
        out_shape=jax.ShapeDtypeStruct((n, c, 1), jnp.float32),
        grid=(n, s_tiles),
        in_specs=[
            pl.BlockSpec((1, c, tile_s), lambda b, t: (b, 0, t)),
            pl.BlockSpec((cr, c), lambda b, t: (0, 0)),
            pl.BlockSpec((c, cr), lambda b, t: (0, 0)),
        ],
        out_specs=pl.BlockSpec((1, c, 1), lambda b, t: (b, 0, 0)),
        scratch_shapes=[pltpu.VMEM((1, c, 1), jnp.float32)],
        compiler_params=pltpu.CompilerParams(
            dimension_semantics=("parallel", "arbitrary"),
            vmem_limit_bytes=_VMEM_LIMIT_BYTES),
        cost_estimate=pl.CostEstimate(
            flops=n * c * s + 4 * n * c * cr,
            transcendentals=n * c,
            bytes_accessed=n * c * s * itemsize + 8 * c * cr + 4 * n * c),
    )(x3, w1, w2)

    y3 = pl.pallas_call(
        _apply_gate_kernel,
        out_shape=jax.ShapeDtypeStruct((n, c, s), x3.dtype),
        grid=(n, s_tiles),
        in_specs=[
            pl.BlockSpec((1, c, tile_s), lambda b, t: (b, 0, t)),
            pl.BlockSpec((1, c, 1), lambda b, t: (b, 0, 0)),
        ],
        out_specs=pl.BlockSpec((1, c, tile_s), lambda b, t: (b, 0, t)),
        compiler_params=pltpu.CompilerParams(
            dimension_semantics=("parallel", "parallel"),
            vmem_limit_bytes=_VMEM_LIMIT_BYTES),
        cost_estimate=pl.CostEstimate(
            flops=n * c * s,
            transcendentals=0,
            bytes_accessed=2 * n * c * s * itemsize + 4 * n * c),
    )(x3, gate)

    return y3.reshape(n, c, h, w)


# ------------------------------ demo / check ------------------------------

if __name__ == "__main__":
    key = jax.random.PRNGKey(0)
    kx, k1, k2 = jax.random.split(key, 3)

    N, C, H, W = 2, 32, 16, 16
    R = 8

    x = jax.random.normal(kx, (N, C, H, W), jnp.float32)
    w1 = 0.1 * jax.random.normal(k1, (C // R, C), jnp.float32)   # Linear(C -> C//R).weight
    w2 = 0.1 * jax.random.normal(k2, (C, C // R), jnp.float32)   # Linear(C//R -> C).weight

    # Pure-JAX reference of Squeeze_Excitation.forward (exact sigmoid, no bias).
    pooled = jnp.mean(x, axis=(2, 3))                            # (N, C)
    gate_ref = jax.nn.sigmoid(jnp.maximum(pooled @ w1.T, 0.0) @ w2.T)
    ref = x * gate_ref[:, :, None, None]

    # Primary fused path.
    fwd = jax.jit(squeeze_excitation_forward)
    y = fwd(x, w1, w2)
    jax.block_until_ready(y)
    assert y.shape == x.shape, y.shape
    assert jnp.allclose(y, ref, atol=1e-5, rtol=1e-4), float(jnp.max(jnp.abs(y - ref)))

    # Two-pass fallback path (forced via a tiny block budget) stays correct.
    fwd_fallback = jax.jit(functools.partial(squeeze_excitation_forward,
                                             block_budget_bytes=1024))
    y2 = fwd_fallback(x, w1, w2)
    jax.block_until_ready(y2)
    assert jnp.allclose(y2, ref, atol=1e-5, rtol=1e-4), float(jnp.max(jnp.abs(y2 - ref)))

    print("KERNEL_OK")
</pallas_src>

<mosaic_0001>
module attributes {stable_mosaic.version = 11 : i64} {
  func.func @_se_fused_kernel(%arg0: i32, %arg1: memref<2x32x256xf32, #tpu.memory_space<vmem>>, %arg2: memref<32x4xf32, #tpu.memory_space<vmem>>, %arg3: memref<4x32xf32, #tpu.memory_space<vmem>>, %arg4: memref<2x32x256xf32, #tpu.memory_space<vmem>>) attributes {dimension_semantics = [#tpu.dimension_semantics<parallel>], iteration_bounds = array<i64: 1>, scalar_prefetch = 0 : i64, scratch_operands = 0 : i64, tpu.core_type = #tpu.core_type<tc>, window_params = [{transform_indices = @transform_0, window_bounds = array<i64: 2, 32, 256>}, {pipeline_mode = #tpu.pipeline_mode<synchronous>, transform_indices = @transform_1, window_bounds = array<i64: 32, 4>}, {pipeline_mode = #tpu.pipeline_mode<synchronous>, transform_indices = @transform_2, window_bounds = array<i64: 4, 32>}, {transform_indices = @transform_3, window_bounds = array<i64: 2, 32, 256>}]} {
    %c0 = arith.constant 0 : index
    %c0_0 = arith.constant 0 : index
    %c0_1 = arith.constant 0 : index
    %0 = vector.load %arg1[%c0, %c0_0, %c0_1] : memref<2x32x256xf32, #tpu.memory_space<vmem>>, vector<2x32x256xf32>
    %cst = arith.constant dense<0.000000e+00> : vector<2x32xf32>
    %1 = vector.multi_reduction <add>, %0, %cst [2] : vector<2x32x256xf32> to vector<2x32xf32>
    %cst_2 = arith.constant 3.906250e-03 : f32
    %2 = vector.broadcast %cst_2 : f32 to vector<2x32xf32>
    %3 = arith.mulf %1, %2 : vector<2x32xf32>
    %c0_3 = arith.constant 0 : index
    %c0_4 = arith.constant 0 : index
    %4 = vector.load %arg2[%c0_3, %c0_4] : memref<32x4xf32, #tpu.memory_space<vmem>>, vector<32x4xf32>
    %c0_5 = arith.constant 0 : index
    %c0_6 = arith.constant 0 : index
    %5 = vector.load %arg3[%c0_5, %c0_6] : memref<4x32xf32, #tpu.memory_space<vmem>>, vector<4x32xf32>
    %cst_7 = arith.constant dense<0.000000e+00> : vector<2x4xf32>
    %6 = tpu.matmul %3, %4, %cst_7 {dimension_numbers = #tpu.dot_dimension_numbers<[1], [0], [0], [1], [0, 0, 1, 1], [], []>} : vector<2x32xf32>, vector<32x4xf32>, vector<2x4xf32> -> vector<2x4xf32>
    %cst_8 = arith.constant 0.000000e+00 : f32
    %7 = vector.broadcast %cst_8 : f32 to vector<2x4xf32>
    %8 = arith.maximumf %6, %7 : vector<2x4xf32>
    %cst_9 = arith.constant dense<0.000000e+00> : vector<2x32xf32>
    %9 = tpu.matmul %8, %5, %cst_9 {dimension_numbers = #tpu.dot_dimension_numbers<[1], [0], [0], [1], [0, 0, 1, 1], [], []>} : vector<2x4xf32>, vector<4x32xf32>, vector<2x32xf32> -> vector<2x32xf32>
    %10 = arith.negf %9 : vector<2x32xf32>
    %11 = math.exp %10 : vector<2x32xf32>
    %cst_10 = arith.constant 1.000000e+00 : f32
    %12 = vector.broadcast %cst_10 : f32 to vector<2x32xf32>
    %13 = arith.addf %12, %11 : vector<2x32xf32>
    %14 = arith.divf %12, %13 : vector<2x32xf32>
    %15 = vector.shape_cast %14 : vector<2x32xf32> to vector<2x32x1xf32>
    %16 = vector.broadcast %15 : vector<2x32x1xf32> to vector<2x32x256xf32>
    %17 = arith.mulf %0, %16 : vector<2x32x256xf32>
    %c0_11 = arith.constant 0 : index
    %c0_12 = arith.constant 0 : index
    %c0_13 = arith.constant 0 : index
    %18 = vector.load %arg4[%c0_11, %c0_12, %c0_13] : memref<2x32x256xf32, #tpu.memory_space<vmem>>, vector<2x32x256xf32>
    tpu.vector_store %arg4[%c0_11, %c0_12, %c0_13], %17 {strides = array<i32>} : memref<2x32x256xf32, #tpu.memory_space<vmem>>, vector<2x32x256xf32>,
    return
  }
  func.func @transform_0(%arg0: i32) -> (i32, i32, i32) {
    %c0_i32 = arith.constant 0 : i32
    %c0_i32_0 = arith.constant 0 : i32
    %c0_i32_1 = arith.constant 0 : i32
    return %arg0, %c0_i32, %c0_i32_0 : i32, i32, i32
  }
  func.func @transform_1(%arg0: i32) -> (i32, i32) {
    %c0_i32 = arith.constant 0 : i32
    %c0_i32_0 = arith.constant 0 : i32
    %c0_i32_1 = arith.constant 0 : i32
    return %c0_i32, %c0_i32_0 : i32, i32
  }
  func.func @transform_2(%arg0: i32) -> (i32, i32) {
    %c0_i32 = arith.constant 0 : i32
    %c0_i32_0 = arith.constant 0 : i32
    %c0_i32_1 = arith.constant 0 : i32
    return %c0_i32, %c0_i32_0 : i32, i32
  }
  func.func @transform_3(%arg0: i32) -> (i32, i32, i32) {
    %c0_i32 = arith.constant 0 : i32
    %c0_i32_0 = arith.constant 0 : i32
    %c0_i32_1 = arith.constant 0 : i32
    return %arg0, %c0_i32, %c0_i32_0 : i32, i32, i32
  }
}

</mosaic_0001>

<llo_original>
// kernel: squeeze_excitation_forward.1
$region0: #{squeeze_excitation_forward.1}
  #allocation0 [shape = 'u32[]', space=smem, size = 0x4, offset = 0x4, fixed_abs, tag = 'smem constant byte address 0x4 - core index']
  #allocation1 [shape = 'u32[72,128]{1,0:T(1,128)}', space=vmem, size = 0x9000, scoped, tag = 'internal scratch']
  %s0 = inlined_call_operand.vmem [shape: f32[2,32,256], index: 0, kind: input, shape index: {}]
  %s1 = inlined_call_operand.vmem [shape: f32[32,4], index: 1, kind: input, shape index: {}]
  %s2 = inlined_call_operand.vmem [shape: f32[4,32], index: 2, kind: input, shape index: {}]
  %s3 = inlined_call_operand.vmem [shape: f32[2,32,256], index: 3, kind: output, shape index: {}]
  %s4 = sld [smem:[#allocation0]]
  $region22: #{squeeze_excitation_forward.1} parent=0
    _
  %s6 = ssub.s32 1, %s4
  %s7 = scalar_select 0, %s6, %s4
  // Predicated region
  $region2: #{squeeze_excitation_forward.1} parent=0 // pred_check
    _
  $region3: #{squeeze_excitation_forward.1} parent=0 // pred_check_branch
    %9 = sbr.rel (0) target = $region5
  $region4: #{squeeze_excitation_forward.1} parent=0 // pred_region
    _
  $region5: #{squeeze_excitation_forward.1} parent=0 // pred_fallthru
    _
  // Predicated region
  $region6: #{squeeze_excitation_forward.1} parent=0 // pred_check
    _
  $region7: #{squeeze_excitation_forward.1} parent=0 // pred_check_branch
    %11 = sbr.rel (0) target = $region9
  $region8: #{squeeze_excitation_forward.1} parent=0 // pred_region
    _
  $region9: #{squeeze_excitation_forward.1} parent=0 // pred_fallthru
    _
  // Predicated region
  $region10: #{squeeze_excitation_forward.1} parent=0 // pred_check
    _
  $region11: #{squeeze_excitation_forward.1} parent=0 // pred_check_branch
    %13 = sbr.rel (0) target = $region13
  $region12: #{squeeze_excitation_forward.1} parent=0 // pred_region
    _
  $region13: #{squeeze_excitation_forward.1} parent=0 // pred_fallthru
    _
  %v14 = vld [vmem:[%s0] sm:$0xff]
  %v15 = vld [vmem:[%s0 + $0x8] sm:$0xff]
  %v16 = vld [vmem:[%s0 + $0x10] sm:$0xff]
  %v17 = vld [vmem:[%s0 + $0x18] sm:$0xff]
  %v18 = vld [vmem:[%s0 + $0x20] sm:$0xff]
  %v19 = vld [vmem:[%s0 + $0x28] sm:$0xff]
  %v20 = vld [vmem:[%s0 + $0x30] sm:$0xff]
  %v21 = vld [vmem:[%s0 + $0x38] sm:$0xff]
  %v22 = vld [vmem:[%s0 + $0x40] sm:$0xff]
  %v23 = vld [vmem:[%s0 + $0x48] sm:$0xff]
  %v24 = vld [vmem:[%s0 + $0x50] sm:$0xff]
  %v25 = vld [vmem:[%s0 + $0x58] sm:$0xff]
  %v26 = vld [vmem:[%s0 + $0x60] sm:$0xff]
  %v27 = vld [vmem:[%s0 + $0x68] sm:$0xff]
  %v28 = vld [vmem:[%s0 + $0x70] sm:$0xff]
  %v29 = vld [vmem:[%s0 + $0x78] sm:$0xff]
  %v30 = vadd.f32 %v14, %v15
  %31 = vadd.xlane.f32.xlu0 %v30
  %v32 = vpop.xlane.xlu0 %31
  %v33 = vadd.f32 %v16, %v17
  %34 = vadd.xlane.f32.xlu0 %v33
  %v35 = vpop.xlane.xlu0 %34
  %v36 = vadd.f32 %v18, %v19
  %37 = vadd.xlane.f32.xlu0 %v36
  %v38 = vpop.xlane.xlu0 %37
  %v39 = vadd.f32 %v20, %v21
  %40 = vadd.xlane.f32.xlu0 %v39
  %v41 = vpop.xlane.xlu0 %40
  %v42 = vadd.f32 %v22, %v23
  %43 = vadd.xlane.f32.xlu0 %v42
  %v44 = vpop.xlane.xlu0 %43
  %v45 = vadd.f32 %v24, %v25
  %46 = vadd.xlane.f32.xlu0 %v45
  %v47 = vpop.xlane.xlu0 %46
  %v48 = vadd.f32 %v26, %v27
  %49 = vadd.xlane.f32.xlu0 %v48
  %v50 = vpop.xlane.xlu0 %49
  %v51 = vadd.f32 %v28, %v29
  %52 = vadd.xlane.f32.xlu0 %v51
  %v53 = vpop.xlane.xlu0 %52
  %v54 = vmul.f32 %v32, 0.00390625
  %v55 = vmul.f32 %v35, 0.00390625
  %v56 = vmul.f32 %v38, 0.00390625
  %v57 = vmul.f32 %v41, 0.00390625
  %v58 = vmul.f32 %v44, 0.00390625
  %v59 = vmul.f32 %v47, 0.00390625
  %v60 = vmul.f32 %v50, 0.00390625
  %v61 = vmul.f32 %v53, 0.00390625
  %v62 = vld [vmem:[%s1] sm:$0xff]
  %v63 = vld [vmem:[%s1 + $0x8] sm:$0xff]
  %v64 = vld [vmem:[%s1 + $0x10] sm:$0xff]
  %v65 = vld [vmem:[%s1 + $0x18] sm:$0xff]
  %v66 = vld [vmem:[%s2] sm:$0xf]
  %v75 = vlaneseq
  %v76 = vand.u32 %v75, 127
  %v77 = vperm.slane %v54, %v76
  %v78 = vadd.s32 %v76, 4294967288
  %v79 = vperm.slane %v55, %v78
  %vm80 = vcmask 130112
  %v81 = vsel %vm80, %v79, %v77
  %v82 = vadd.s32 %v76, 4294967280
  %v83 = vperm.slane %v56, %v82
  %vm84 = vcmask 195712
  %v85 = vsel %vm84, %v83, %v81
  %v86 = vadd.s32 %v76, 4294967272
  %v87 = vperm.slane %v57, %v86
  %vm88 = vcmask 261312
  %v89 = vsel %vm88, %v87, %v85
  %v90 = vperm.slane %v58, %v76
  %v91 = vperm.slane %v59, %v78
  %v92 = vsel %vm80, %v91, %v90
  %v93 = vperm.slane %v60, %v82
  %v94 = vsel %vm84, %v93, %v92
  %v95 = vperm.slane %v61, %v86
  %v96 = vsel %vm88, %v95, %v94
  %vm97 = vcmask 1041409
  %v98 = vsel %vm97, %v96, %v89
  %vm99 = vcmask 261120
  %v100 = vsel %vm99, %v98, 0
  %102 = vmatpush.msra.mxu0 0.0
  %103 = vmatpush.msra.mxu0 0.0
  %104 = vmatpush.msra.mxu0 0.0
  %105 = vmatpush.msra.mxu0 0.0
  %106 = vmatpush.msra.mxu0 0.0
  %107 = vmatpush.msra.mxu0 0.0
  %108 = vmatpush.msra.mxu0 0.0
  %109 = vmatpush.msra.mxu0 0.0
  %110 = vmatpush.msra.mxu0 0.0
  %111 = vmatpush.msra.mxu0 0.0
  %112 = vmatpush.msra.mxu0 0.0
  %113 = vmatpush.msra.mxu0 0.0
  %114 = vmatpush.msra.mxu0 %v65
  %115 = vmatpush.msra.mxu0 %v64
  %116 = vmatpush.msra.mxu0 %v63
  %117 = vmatpush.msra.mxu0 %v62
  %118 = vmatmul.f32.gmra.mxu0 %v100
  %v119 = vpop.f32.mrf.mxu0
  %v120 = vadd.f32 0.0, %v119
  %121 = vdwg.mxu0
  %v122 = vmax.f32 %v120, 0.0
  %vm123 = vcmask 31744
  %v125 = vsel %vm123, %v122, 0
  %vm127 = vcmask 1043456
  %v129 = vsel %vm127, %v66, 0
  %131 = vmatpush.msra.mxu0 0.0
  %132 = vmatpush.msra.mxu0 0.0
  %133 = vmatpush.msra.mxu0 0.0
  %134 = vmatpush.msra.mxu0 0.0
  %135 = vmatpush.msra.mxu0 0.0
  %136 = vmatpush.msra.mxu0 0.0
  %137 = vmatpush.msra.mxu0 0.0
  %138 = vmatpush.msra.mxu0 0.0
  %139 = vmatpush.msra.mxu0 0.0
  %140 = vmatpush.msra.mxu0 0.0
  %141 = vmatpush.msra.mxu0 0.0
  %142 = vmatpush.msra.mxu0 0.0
  %143 = vmatpush.msra.mxu0 0.0
  %144 = vmatpush.msra.mxu0 0.0
  %145 = vmatpush.msra.mxu0 0.0
  %146 = vmatpush.msra.mxu0 %v129
  %147 = vmatmul.f32.gmra.mxu0 %v125
  %v148 = vpop.f32.mrf.mxu0
  %v149 = vadd.f32 0.0, %v148
  %150 = vdwg.mxu0
  %v151 = vxor.u32 %v149, 2147483648
  %v152 = vmul.f32 %v151, 1.442695
  %v153 = vpow.pop %v152
  %v154 = vadd.f32 %v153, 1.0
  %v155 = vrcp.pop %v154
  %v156 = vmul.f32 %v154, %v155
  %v157 = vsub.f32 1.0, %v156
  %v158 = vmul.f32 %v155, %v157
  %v159 = vadd.f32 %v155, %v158
  %vm160 = vweird.f32 %v154
  %vm161 = vweird.f32 %v155
  %vm162 = vmor %vm160, %vm161
  %v163 = vsel %vm162, %v155, %v159
  %v164 = vand.u32 2147483647, %v154
  %vm165 = vcmp.eq.f32.partialorder %v164, 8.507059e+37
  %v166 = vand.u32 %v154, 2147483648
  %v167 = vor.u32 1.1754944e-38, %v166
  %v168 = vsel %vm165, %v167, %v163
  %v169 = vmul.f32 1.0, %v168
  %v170 = vperm.slane %v169, 0
  %v171 = vlaneseq
  %v172 = vshrl.u32 %v171, 7
  %174 = vset.pattern.permute.xlu0 %v172
  %175 = vperm.xlu0 %174, %v170
  %v176 = vpop.permute.xlu0 %175
  %v177 = vlaneseq
  %v178 = vshrl.u32 %v177, 7
  %v179 = vadd.s32 %v178, 8
  %180 = vset.pattern.permute.xlu0 %v179
  %181 = vperm.xlu0 %180, %v170
  %v182 = vpop.permute.xlu0 %181
  %v183 = vlaneseq
  %v184 = vshrl.u32 %v183, 7
  %v185 = vadd.s32 %v184, 16
  %186 = vset.pattern.permute.xlu0 %v185
  %187 = vperm.xlu0 %186, %v170
  %v188 = vpop.permute.xlu0 %187
  %v189 = vlaneseq
  %v190 = vshrl.u32 %v189, 7
  %v191 = vadd.s32 %v190, 24
  %192 = vset.pattern.permute.xlu0 %v191
  %193 = vperm.xlu0 %192, %v170
  %v194 = vpop.permute.xlu0 %193
  %v195 = vperm.slane %v169, 1
  %v196 = vlaneseq
  %v197 = vshrl.u32 %v196, 7
  %199 = vset.pattern.permute.xlu0 %v197
  %200 = vperm.xlu0 %199, %v195
  %v201 = vpop.permute.xlu0 %200
  %v202 = vlaneseq
  %v203 = vshrl.u32 %v202, 7
  %v204 = vadd.s32 %v203, 8
  %205 = vset.pattern.permute.xlu0 %v204
  %206 = vperm.xlu0 %205, %v195
  %v207 = vpop.permute.xlu0 %206
  %v208 = vlaneseq
  %v209 = vshrl.u32 %v208, 7
  %v210 = vadd.s32 %v209, 16
  %211 = vset.pattern.permute.xlu0 %v210
  %212 = vperm.xlu0 %211, %v195
  %v213 = vpop.permute.xlu0 %212
  %v214 = vlaneseq
  %v215 = vshrl.u32 %v214, 7
  %v216 = vadd.s32 %v215, 24
  %217 = vset.pattern.permute.xlu0 %v216
  %218 = vperm.xlu0 %217, %v195
  %v219 = vpop.permute.xlu0 %218
  %v220 = vmul.f32 %v14, %v176
  %v221 = vmul.f32 %v15, %v176
  %v222 = vmul.f32 %v16, %v182
  %v223 = vmul.f32 %v17, %v182
  %v224 = vmul.f32 %v18, %v188
  %v225 = vmul.f32 %v19, %v188
  %v226 = vmul.f32 %v20, %v194
  %v227 = vmul.f32 %v21, %v194
  %v228 = vmul.f32 %v22, %v201
  %v229 = vmul.f32 %v23, %v201
  %v230 = vmul.f32 %v24, %v207
  %v231 = vmul.f32 %v25, %v207
  %v232 = vmul.f32 %v26, %v213
  %v233 = vmul.f32 %v27, %v213
  %v234 = vmul.f32 %v28, %v219
  %v235 = vmul.f32 %v29, %v219
  %236 = vst [vmem:[%s3] sm:$0xff] %v220
  %237 = vst [vmem:[%s3 + $0x8] sm:$0xff] %v221
  %238 = vst [vmem:[%s3 + $0x10] sm:$0xff] %v222
  %239 = vst [vmem:[%s3 + $0x18] sm:$0xff] %v223
  %240 = vst [vmem:[%s3 + $0x20] sm:$0xff] %v224
  %241 = vst [vmem:[%s3 + $0x28] sm:$0xff] %v225
  %242 = vst [vmem:[%s3 + $0x30] sm:$0xff] %v226
  %243 = vst [vmem:[%s3 + $0x38] sm:$0xff] %v227
  %244 = vst [vmem:[%s3 + $0x40] sm:$0xff] %v228
  %245 = vst [vmem:[%s3 + $0x48] sm:$0xff] %v229
  %246 = vst [vmem:[%s3 + $0x50] sm:$0xff] %v230
  %247 = vst [vmem:[%s3 + $0x58] sm:$0xff] %v231
  %248 = vst [vmem:[%s3 + $0x60] sm:$0xff] %v232
  %249 = vst [vmem:[%s3 + $0x68] sm:$0xff] %v233
  %250 = vst [vmem:[%s3 + $0x70] sm:$0xff] %v234
  %251 = vst [vmem:[%s3 + $0x78] sm:$0xff] %v235
  // Predicated region
  $region14: #{squeeze_excitation_forward.1} parent=0 // pred_check
    _
  $region15: #{squeeze_excitation_forward.1} parent=0 // pred_check_branch
    %253 = sbr.rel (0) target = $region17
  $region16: #{squeeze_excitation_forward.1} parent=0 // pred_region
    _
  $region17: #{squeeze_excitation_forward.1} parent=0 // pred_fallthru
    _
  // Predicated region
  $region18: #{squeeze_excitation_forward.1} parent=0 // pred_check
    _
  $region19: #{squeeze_excitation_forward.1} parent=0 // pred_check_branch
    %255 = sbr.rel (0) target = $region21
  $region20: #{squeeze_excitation_forward.1} parent=0 // pred_region
    _
  $region21: #{squeeze_excitation_forward.1} parent=0 // pred_fallthru
    _

</llo_original>
